<compile_context>
chip_gen: v6e
topology: v6e:2x2x1
jax: 0.10.0
libtpu: 0.0.40
codegen_flags: <defaults>
</compile_context>

<pallas_src>
import functools

import jax
import jax.numpy as jnp
from jax.experimental import pallas as pl
from jax.experimental.pallas import tpu as pltpu

MAX_CORNERS = 200     # TODO(synk): top-k (maxCorners) selection by response is a
                      # data-dependent sort; not enforced in-kernel.
QUALITY_LEVEL = 0.01
MIN_DISTANCE = 3      # TODO(synk): cv2's greedy minDistance grid suppression is a
                      # sequential data-dependent loop; only 3x3 NMS is done here.

_HALO = 3             # gray rows of halo needed: resp needs 2, +1 for the NMS window
_MARGIN = 2           # border margin corrupted by gradient + window reach
# NOTE: if any stencil ever grows beyond 3x3, _HALO and _MARGIN must grow with it.


def _resp_kernel(gray_hbm, resp_ref, lm_ref, gbuf, pad_a, pad_b, sem,
                 *, hs, h, w):
    """Phase 1: Shi-Tomasi response + 3x3-NMS local-max map for one row strip."""
    f32 = jnp.float32
    wp = resp_ref.shape[2]
    b = pl.program_id(0)
    s = pl.program_id(1)

    # ---- fetch the gray strip with a 3-row halo (rows are pre-padded in HBM) ----
    row0 = pl.multiple_of(s * hs, 8)
    cp = pltpu.make_async_copy(
        gray_hbm.at[b, pl.ds(row0, hs + 2 * _HALO), :], gbuf, sem.at[0])
    cp.start()
    cp.wait()
    # TODO(synk): double-buffer this halo DMA across grid steps to hide it.

    def shx(a, dx):
        # out[y, x] = a[y, x + dx]; lane wrap-around is masked by the column mask.
        return pltpu.roll(a, shift=(-dx) % wp, axis=1)

    ne = hs + 4                       # extended rows: strip rows [-2, hs+2)
    g_up = gbuf[pl.ds(0, ne), :]      # gray[y - 1, x]
    g_mid = gbuf[pl.ds(1, ne), :]     # gray[y, x]
    g_dn = gbuf[pl.ds(2, ne), :]      # gray[y + 1, x]

    # ---- 3x3 Sobel, separable; vertical taps are sublane-offset VMEM reads ----
    vsmooth = g_up + 2.0 * g_mid + g_dn
    vdiff = g_dn - g_up
    ix = shx(vsmooth, 1) - shx(vsmooth, -1)
    iy = shx(vdiff, 1) + 2.0 * vdiff + shx(vdiff, -1)

    def box3(a, buf):
        # separable 3x3 box sum: lane rolls horizontally, sublane-offset reads
        # of a scratch buffer vertically.
        buf[...] = shx(a, -1) + a + shx(a, 1)
        return (buf[pl.ds(0, hs + 2), :] + buf[pl.ds(1, hs + 2), :]
                + buf[pl.ds(2, hs + 2), :])

    # ping-pong the two scratches so consecutive store->load chains alternate
    sxx = box3(ix * ix, pad_a)
    syy = box3(iy * iy, pad_b)
    sxy = box3(ix * iy, pad_a)

    # ---- Shi-Tomasi minimum eigenvalue response (strip rows [-1, hs+1)) ----
    resp = 0.5 * (sxx + syy) - jnp.sqrt(
        jnp.square(0.5 * (sxx - syy)) + jnp.square(sxy))

    # Border / padding mask from two small masks (hoisted out of the per-pixel
    # path: no full-frame iota / compare / select per step).
    col = jax.lax.broadcasted_iota(jnp.int32, (1, wp), 1)
    cmask = ((col >= _MARGIN) & (col < w - _MARGIN)).astype(f32)
    rowi = jax.lax.broadcasted_iota(jnp.int32, (hs + 2, 1), 0) + (s * hs - 1)
    rmask = ((rowi >= _MARGIN) & (rowi < h - _MARGIN)).astype(f32)
    resp = resp * rmask * cmask

    # ---- 3x3 non-max-suppression dilation, separable -----------------------
    hmax = jnp.maximum(jnp.maximum(shx(resp, -1), resp), shx(resp, 1))
    pad_b[pl.ds(0, hs + 2), :] = resp      # hold resp for the centre-row slice
    pad_a[pl.ds(0, hs + 2), :] = hmax
    dil = jnp.maximum(
        jnp.maximum(pad_a[pl.ds(0, hs), :], pad_a[pl.ds(1, hs), :]),
        pad_a[pl.ds(2, hs), :])
    resp_c = pad_b[pl.ds(1, hs), :]        # strip rows [0, hs)

    resp_ref[0] = resp_c
    lm_ref[0] = ((resp_c >= dil) & (resp_c > 0.0)).astype(f32)


def _threshold_kernel(resp_ref, lm_ref, thr_ref, o_ref):
    """Phase 2: qualityLevel threshold (thr = QUALITY_LEVEL * per-image max)."""
    o_ref[...] = jnp.where(resp_ref[...] > thr_ref[...], lm_ref[...], 0.0)


def _vmem_capacity_bytes():
    try:
        cap = getattr(pltpu.get_tpu_info(), "vmem_capacity_bytes", None)
        if cap:
            return int(cap)
    except Exception:
        pass
    return 64 * 1024 * 1024   # conservative fallback (v7x per-core VMEM)


def _phase1_vmem_bytes(hs, wp):
    scratch = ((hs + 2 * _HALO) + 2 * (hs + 4)) * wp * 4
    outs = 2 * 2 * hs * wp * 4              # two double-buffered output blocks
    live = 12 * (hs + 4) * wp * 4           # live f32 temporaries (~12-15)
    return scratch + outs + live


def _pick_strip_rows(h, wp, vmem_cap):
    h8 = max(8, -(-h // 8) * 8)
    budget = int(0.45 * vmem_cap)
    hs = 8
    cand = 8
    while cand <= 512 and cand <= h8:
        if _phase1_vmem_bytes(cand, wp) <= budget:
            hs = cand
        cand *= 2
    return min(hs, h8)


def corner_preprocess(batch_img, strip_rows=None):
    """batch_img: (N, 3, H, W) float32 in [0, 1], channel order B, G, R.
    Returns (N, 1, H, W) float32 map with 1.0 at detected Shi-Tomasi corners."""
    n, c, h, w = batch_img.shape
    assert c == 3, "cv2.COLOR_BGR2GRAY expects 3 channels"

    vmem_cap = _vmem_capacity_bytes()
    wp = max(128, ((w + 127) // 128) * 128)            # lane-dense last dim
    if strip_rows is None:
        hs = _pick_strip_rows(h, wp, vmem_cap)
    else:
        hs = max(8, ((int(strip_rows) + 7) // 8) * 8)
    hp = ((h + hs - 1) // hs) * hs
    num_strips = hp // hs

    # BGR -> gray with cv2 coefficients. The x255 of the reference is dropped:
    # the corner decision is invariant to any uniform positive scaling of gray.
    coeff = jnp.array([0.114, 0.587, 0.299], dtype=jnp.float32)
    gray = jnp.einsum('nchw,c->nhw', batch_img.astype(jnp.float32), coeff)
    # Zero pad: 3-row halo top/bottom (+ strip rounding) and lane padding to wp.
    gray_p = jnp.pad(gray, ((0, 0), (_HALO, hp - h + _HALO), (0, wp - w)))

    est1 = _phase1_vmem_bytes(hs, wp)
    limit1 = int(min(0.9 * vmem_cap, max(32 * 1024 * 1024, 1.5 * est1)))
    est2 = 4 * 2 * hs * wp * 4
    limit2 = int(min(0.9 * vmem_cap, max(32 * 1024 * 1024, 2 * est2)))

    # ---- Phase 1: strip-tiled response + local-max map ----------------------
    resp, lm = pl.pallas_call(
        functools.partial(_resp_kernel, hs=hs, h=h, w=w),
        out_shape=(jax.ShapeDtypeStruct((n, hp, wp), jnp.float32),
                   jax.ShapeDtypeStruct((n, hp, wp), jnp.float32)),
        grid=(n, num_strips),
        in_specs=[pl.BlockSpec(memory_space=pl.ANY)],
        out_specs=(pl.BlockSpec((1, hs, wp), lambda b, s: (b, s, 0)),
                   pl.BlockSpec((1, hs, wp), lambda b, s: (b, s, 0))),
        scratch_shapes=[pltpu.VMEM((hs + 2 * _HALO, wp), jnp.float32),
                        pltpu.VMEM((hs + 4, wp), jnp.float32),
                        pltpu.VMEM((hs + 4, wp), jnp.float32),
                        pltpu.SemaphoreType.DMA((1,))],
        compiler_params=pltpu.CompilerParams(
            dimension_semantics=("parallel", "parallel"),
            vmem_limit_bytes=limit1),
    )(gray_p)

    # Only cross-strip coupling: per-image global max for the qualityLevel thr.
    thr = (QUALITY_LEVEL * jnp.max(resp, axis=(1, 2))).reshape(n, 1, 1)
    thr = thr.astype(jnp.float32)

    # ---- Phase 2: elementwise threshold (no halo needed) ---------------------
    corner = pl.pallas_call(
        _threshold_kernel,
        out_shape=jax.ShapeDtypeStruct((n, hp, wp), jnp.float32),
        grid=(n, num_strips),
        in_specs=[pl.BlockSpec((1, hs, wp), lambda b, s: (b, s, 0)),
                  pl.BlockSpec((1, hs, wp), lambda b, s: (b, s, 0)),
                  pl.BlockSpec((1, 1, 1), lambda b, s: (b, 0, 0))],
        out_specs=pl.BlockSpec((1, hs, wp), lambda b, s: (b, s, 0)),
        compiler_params=pltpu.CompilerParams(
            dimension_semantics=("parallel", "parallel"),
            vmem_limit_bytes=limit2),
    )(resp, lm, thr)

    # TODO(synk): for tiny images, pack several batch images along the lane axis
    # (per-image segment max + masks) to avoid wasting 7/8 of each vreg at W=16.
    return corner[:, :h, :w][:, None, :, :]


if __name__ == "__main__":
    key = jax.random.PRNGKey(0)
    # Small NCHW batch of "images" in [0, 1], 3 channels (B, G, R), 16x16 spatial
    x = jax.random.uniform(key, (2, 3, 16, 16), dtype=jnp.float32)

    out = corner_preprocess(x, strip_rows=8)       # two 8-row strips per image
    out = jax.block_until_ready(out)

    assert out.shape == (2, 1, 16, 16)
    assert out.dtype == jnp.float32
    # Corner map is binary {0, 1}
    assert bool(jnp.all((out == 0.0) | (out == 1.0)))

    # Strip-tiling invariance: a single whole-image strip must give the same map.
    out_full = jax.block_until_ready(corner_preprocess(x, strip_rows=16))
    assert bool(jnp.all(out == out_full))

    print("KERNEL_OK")
</pallas_src>

<mosaic_0001>
module attributes {stable_mosaic.version = 11 : i64} {
  func.func @_resp_kernel(%arg0: i32, %arg1: i32, %arg2: memref<2x22x128xf32, #tpu.memory_space<any>>, %arg3: memref<1x8x128xf32, #tpu.memory_space<vmem>>, %arg4: memref<1x8x128xf32, #tpu.memory_space<vmem>>, %arg5: memref<14x128xf32, #tpu.memory_space<vmem>>, %arg6: memref<12x128xf32, #tpu.memory_space<vmem>>, %arg7: memref<12x128xf32, #tpu.memory_space<vmem>>, %arg8: memref<1x!tpu.dma_semaphore, #tpu.memory_space<semaphore_mem>>) attributes {dimension_semantics = [#tpu.dimension_semantics<parallel>, #tpu.dimension_semantics<parallel>], iteration_bounds = array<i64: 2, 2>, scalar_prefetch = 0 : i64, scratch_operands = 4 : i64, tpu.core_type = #tpu.core_type<tc>, window_params = [{}, {transform_indices = @transform_1, window_bounds = array<i64: 1, 8, 128>}, {transform_indices = @transform_2, window_bounds = array<i64: 1, 8, 128>}]} {
    %c8_i32 = arith.constant 8 : i32
    %0 = arith.muli %arg1, %c8_i32 : i32
    %1 = tpu.assume_multiple %0, 8 : i32
    %c0_i32 = arith.constant 0 : i32
    %c0_i32_0 = arith.constant 0 : i32
    %2 = tpu.memref_slice %arg2[%arg0, %1, %c0_i32_0] : memref<2x22x128xf32, #tpu.memory_space<any>> -> memref<1x14x128xf32, #tpu.memory_space<any>>
    %3 = tpu.memref_squeeze %2 : memref<1x14x128xf32, #tpu.memory_space<any>> -> memref<14x128xf32, #tpu.memory_space<any>>
    %4 = tpu.memref_slice %arg8[%c0_i32] : memref<1x!tpu.dma_semaphore, #tpu.memory_space<semaphore_mem>> -> memref<1x!tpu.dma_semaphore, #tpu.memory_space<semaphore_mem>>
    %5 = tpu.memref_squeeze %4 : memref<1x!tpu.dma_semaphore, #tpu.memory_space<semaphore_mem>> -> memref<!tpu.dma_semaphore, #tpu.memory_space<semaphore_mem>>
    tpu.enqueue_dma source(%3 : memref<14x128xf32, #tpu.memory_space<any>>) target(%arg5 : memref<14x128xf32, #tpu.memory_space<vmem>>) target_semaphore(%5 : memref<!tpu.dma_semaphore, #tpu.memory_space<semaphore_mem>>)
    %c0_i32_1 = arith.constant 0 : i32
    %c0_i32_2 = arith.constant 0 : i32
    %6 = tpu.memref_slice %arg2[%arg0, %1, %c0_i32_2] : memref<2x22x128xf32, #tpu.memory_space<any>> -> memref<1x14x128xf32, #tpu.memory_space<any>>
    %7 = tpu.memref_squeeze %6 : memref<1x14x128xf32, #tpu.memory_space<any>> -> memref<14x128xf32, #tpu.memory_space<any>>
    %8 = tpu.memref_slice %arg8[%c0_i32_1] : memref<1x!tpu.dma_semaphore, #tpu.memory_space<semaphore_mem>> -> memref<1x!tpu.dma_semaphore, #tpu.memory_space<semaphore_mem>>
    %9 = tpu.memref_squeeze %8 : memref<1x!tpu.dma_semaphore, #tpu.memory_space<semaphore_mem>> -> memref<!tpu.dma_semaphore, #tpu.memory_space<semaphore_mem>>
    tpu.wait_dma2 semaphore(%9 : memref<!tpu.dma_semaphore, #tpu.memory_space<semaphore_mem>>) src(%7 : memref<14x128xf32, #tpu.memory_space<any>>) dst(%arg5 : memref<14x128xf32, #tpu.memory_space<vmem>>)
    %c0 = arith.constant 0 : index
    %c0_3 = arith.constant 0 : index
    %10 = vector.load %arg5[%c0, %c0_3] : memref<14x128xf32, #tpu.memory_space<vmem>>, vector<12x128xf32>
    %c1 = arith.constant 1 : index
    %c0_4 = arith.constant 0 : index
    %11 = vector.load %arg5[%c1, %c0_4] : memref<14x128xf32, #tpu.memory_space<vmem>>, vector<12x128xf32>
    %c2 = arith.constant 2 : index
    %c0_5 = arith.constant 0 : index
    %12 = vector.load %arg5[%c2, %c0_5] : memref<14x128xf32, #tpu.memory_space<vmem>>, vector<12x128xf32>
    %cst = arith.constant 2.000000e+00 : f32
    %13 = vector.broadcast %cst : f32 to vector<12x128xf32>
    %14 = arith.mulf %13, %11 : vector<12x128xf32>
    %15 = arith.addf %10, %14 : vector<12x128xf32>
    %16 = arith.addf %15, %12 : vector<12x128xf32>
    %17 = arith.subf %12, %10 : vector<12x128xf32>
    %c127_i32 = arith.constant 127 : i32
    %18 = tpu.dynamic_rotate %16 by %c127_i32 dim 1 : vector<12x128xf32>, i32 -> vector<12x128xf32>
    %c1_i32 = arith.constant 1 : i32
    %19 = tpu.dynamic_rotate %16 by %c1_i32 dim 1 : vector<12x128xf32>, i32 -> vector<12x128xf32>
    %20 = arith.subf %18, %19 : vector<12x128xf32>
    %c127_i32_6 = arith.constant 127 : i32
    %21 = tpu.dynamic_rotate %17 by %c127_i32_6 dim 1 : vector<12x128xf32>, i32 -> vector<12x128xf32>
    %cst_7 = arith.constant 2.000000e+00 : f32
    %22 = vector.broadcast %cst_7 : f32 to vector<12x128xf32>
    %23 = arith.mulf %22, %17 : vector<12x128xf32>
    %24 = arith.addf %21, %23 : vector<12x128xf32>
    %c1_i32_8 = arith.constant 1 : i32
    %25 = tpu.dynamic_rotate %17 by %c1_i32_8 dim 1 : vector<12x128xf32>, i32 -> vector<12x128xf32>
    %26 = arith.addf %24, %25 : vector<12x128xf32>
    %27 = arith.mulf %20, %20 : vector<12x128xf32>
    %c1_i32_9 = arith.constant 1 : i32
    %28 = tpu.dynamic_rotate %27 by %c1_i32_9 dim 1 : vector<12x128xf32>, i32 -> vector<12x128xf32>
    %29 = arith.addf %28, %27 : vector<12x128xf32>
    %c127_i32_10 = arith.constant 127 : i32
    %30 = tpu.dynamic_rotate %27 by %c127_i32_10 dim 1 : vector<12x128xf32>, i32 -> vector<12x128xf32>
    %31 = arith.addf %29, %30 : vector<12x128xf32>
    %c0_11 = arith.constant 0 : index
    %c0_12 = arith.constant 0 : index
    %32 = vector.load %arg6[%c0_11, %c0_12] : memref<12x128xf32, #tpu.memory_space<vmem>>, vector<12x128xf32>
    tpu.vector_store %arg6[%c0_11, %c0_12], %31 {strides = array<i32>} : memref<12x128xf32, #tpu.memory_space<vmem>>, vector<12x128xf32>,
    %c0_13 = arith.constant 0 : index
    %c0_14 = arith.constant 0 : index
    %33 = vector.load %arg6[%c0_13, %c0_14] : memref<12x128xf32, #tpu.memory_space<vmem>>, vector<10x128xf32>
    %c1_15 = arith.constant 1 : index
    %c0_16 = arith.constant 0 : index
    %34 = vector.load %arg6[%c1_15, %c0_16] : memref<12x128xf32, #tpu.memory_space<vmem>>, vector<10x128xf32>
    %35 = arith.addf %33, %34 : vector<10x128xf32>
    %c2_17 = arith.constant 2 : index
    %c0_18 = arith.constant 0 : index
    %36 = vector.load %arg6[%c2_17, %c0_18] : memref<12x128xf32, #tpu.memory_space<vmem>>, vector<10x128xf32>
    %37 = arith.addf %35, %36 : vector<10x128xf32>
    %38 = arith.mulf %26, %26 : vector<12x128xf32>
    %c1_i32_19 = arith.constant 1 : i32
    %39 = tpu.dynamic_rotate %38 by %c1_i32_19 dim 1 : vector<12x128xf32>, i32 -> vector<12x128xf32>
    %40 = arith.addf %39, %38 : vector<12x128xf32>
    %c127_i32_20 = arith.constant 127 : i32
    %41 = tpu.dynamic_rotate %38 by %c127_i32_20 dim 1 : vector<12x128xf32>, i32 -> vector<12x128xf32>
    %42 = arith.addf %40, %41 : vector<12x128xf32>
    %c0_21 = arith.constant 0 : index
    %c0_22 = arith.constant 0 : index
    %43 = vector.load %arg7[%c0_21, %c0_22] : memref<12x128xf32, #tpu.memory_space<vmem>>, vector<12x128xf32>
    tpu.vector_store %arg7[%c0_21, %c0_22], %42 {strides = array<i32>} : memref<12x128xf32, #tpu.memory_space<vmem>>, vector<12x128xf32>,
    %c0_23 = arith.constant 0 : index
    %c0_24 = arith.constant 0 : index
    %44 = vector.load %arg7[%c0_23, %c0_24] : memref<12x128xf32, #tpu.memory_space<vmem>>, vector<10x128xf32>
    %c1_25 = arith.constant 1 : index
    %c0_26 = arith.constant 0 : index
    %45 = vector.load %arg7[%c1_25, %c0_26] : memref<12x128xf32, #tpu.memory_space<vmem>>, vector<10x128xf32>
    %46 = arith.addf %44, %45 : vector<10x128xf32>
    %c2_27 = arith.constant 2 : index
    %c0_28 = arith.constant 0 : index
    %47 = vector.load %arg7[%c2_27, %c0_28] : memref<12x128xf32, #tpu.memory_space<vmem>>, vector<10x128xf32>
    %48 = arith.addf %46, %47 : vector<10x128xf32>
    %49 = arith.mulf %20, %26 : vector<12x128xf32>
    %c1_i32_29 = arith.constant 1 : i32
    %50 = tpu.dynamic_rotate %49 by %c1_i32_29 dim 1 : vector<12x128xf32>, i32 -> vector<12x128xf32>
    %51 = arith.addf %50, %49 : vector<12x128xf32>
    %c127_i32_30 = arith.constant 127 : i32
    %52 = tpu.dynamic_rotate %49 by %c127_i32_30 dim 1 : vector<12x128xf32>, i32 -> vector<12x128xf32>
    %53 = arith.addf %51, %52 : vector<12x128xf32>
    %c0_31 = arith.constant 0 : index
    %c0_32 = arith.constant 0 : index
    %54 = vector.load %arg6[%c0_31, %c0_32] : memref<12x128xf32, #tpu.memory_space<vmem>>, vector<12x128xf32>
    tpu.vector_store %arg6[%c0_31, %c0_32], %53 {strides = array<i32>} : memref<12x128xf32, #tpu.memory_space<vmem>>, vector<12x128xf32>,
    %c0_33 = arith.constant 0 : index
    %c0_34 = arith.constant 0 : index
    %55 = vector.load %arg6[%c0_33, %c0_34] : memref<12x128xf32, #tpu.memory_space<vmem>>, vector<10x128xf32>
    %c1_35 = arith.constant 1 : index
    %c0_36 = arith.constant 0 : index
    %56 = vector.load %arg6[%c1_35, %c0_36] : memref<12x128xf32, #tpu.memory_space<vmem>>, vector<10x128xf32>
    %57 = arith.addf %55, %56 : vector<10x128xf32>
    %c2_37 = arith.constant 2 : index
    %c0_38 = arith.constant 0 : index
    %58 = vector.load %arg6[%c2_37, %c0_38] : memref<12x128xf32, #tpu.memory_space<vmem>>, vector<10x128xf32>
    %59 = arith.addf %57, %58 : vector<10x128xf32>
    %60 = arith.addf %37, %48 : vector<10x128xf32>
    %cst_39 = arith.constant 5.000000e-01 : f32
    %61 = vector.broadcast %cst_39 : f32 to vector<10x128xf32>
    %62 = arith.mulf %61, %60 : vector<10x128xf32>
    %63 = arith.subf %37, %48 : vector<10x128xf32>
    %cst_40 = arith.constant 5.000000e-01 : f32
    %64 = vector.broadcast %cst_40 : f32 to vector<10x128xf32>
    %65 = arith.mulf %64, %63 : vector<10x128xf32>
    %66 = arith.mulf %65, %65 : vector<10x128xf32>
    %67 = arith.mulf %59, %59 : vector<10x128xf32>
    %68 = arith.addf %66, %67 : vector<10x128xf32>
    %69 = math.sqrt %68 : vector<10x128xf32>
    %70 = arith.subf %62, %69 : vector<10x128xf32>
    %71 = tpu.iota {dimensions = array<i32: 1>} : vector<1x128xi32>
    %c2_i32 = arith.constant 2 : i32
    %72 = vector.broadcast %c2_i32 : i32 to vector<1x128xi32>
    %73 = arith.cmpi sge, %71, %72 : vector<1x128xi32>
    %c14_i32 = arith.constant 14 : i32
    %74 = vector.broadcast %c14_i32 : i32 to vector<1x128xi32>
    %75 = arith.cmpi slt, %71, %74 : vector<1x128xi32>
    %76 = arith.andi %73, %75 : vector<1x128xi1>
    %77 = arith.extui %76 : vector<1x128xi1> to vector<1x128xi32>
    %78 = arith.sitofp %77 : vector<1x128xi32> to vector<1x128xf32>
    %79 = tpu.iota {dimensions = array<i32: 0>} : vector<10x1xi32>
    %c8_i32_41 = arith.constant 8 : i32
    %80 = arith.muli %arg1, %c8_i32_41 : i32
    %c1_i32_42 = arith.constant 1 : i32
    %81 = arith.subi %80, %c1_i32_42 : i32
    %82 = vector.broadcast %81 : i32 to vector<10x1xi32>
    %83 = arith.addi %79, %82 : vector<10x1xi32>
    %c2_i32_43 = arith.constant 2 : i32
    %84 = vector.broadcast %c2_i32_43 : i32 to vector<10x1xi32>
    %85 = arith.cmpi sge, %83, %84 : vector<10x1xi32>
    %c14_i32_44 = arith.constant 14 : i32
    %86 = vector.broadcast %c14_i32_44 : i32 to vector<10x1xi32>
    %87 = arith.cmpi slt, %83, %86 : vector<10x1xi32>
    %88 = arith.andi %85, %87 : vector<10x1xi1>
    %89 = arith.extui %88 : vector<10x1xi1> to vector<10x1xi32>
    %90 = arith.sitofp %89 : vector<10x1xi32> to vector<10x1xf32>
    %91 = vector.broadcast %90 : vector<10x1xf32> to vector<10x128xf32>
    %92 = arith.mulf %70, %91 : vector<10x128xf32>
    %93 = vector.broadcast %78 : vector<1x128xf32> to vector<10x128xf32>
    %94 = arith.mulf %92, %93 : vector<10x128xf32>
    %c1_i32_45 = arith.constant 1 : i32
    %95 = tpu.dynamic_rotate %94 by %c1_i32_45 dim 1 : vector<10x128xf32>, i32 -> vector<10x128xf32>
    %96 = arith.maximumf %95, %94 : vector<10x128xf32>
    %c127_i32_46 = arith.constant 127 : i32
    %97 = tpu.dynamic_rotate %94 by %c127_i32_46 dim 1 : vector<10x128xf32>, i32 -> vector<10x128xf32>
    %98 = arith.maximumf %96, %97 : vector<10x128xf32>
    %c0_47 = arith.constant 0 : index
    %c0_48 = arith.constant 0 : index
    %99 = vector.load %arg7[%c0_47, %c0_48] : memref<12x128xf32, #tpu.memory_space<vmem>>, vector<10x128xf32>
    tpu.vector_store %arg7[%c0_47, %c0_48], %94 {strides = array<i32>} : memref<12x128xf32, #tpu.memory_space<vmem>>, vector<10x128xf32>,
    %c0_49 = arith.constant 0 : index
    %c0_50 = arith.constant 0 : index
    %100 = vector.load %arg6[%c0_49, %c0_50] : memref<12x128xf32, #tpu.memory_space<vmem>>, vector<10x128xf32>
    tpu.vector_store %arg6[%c0_49, %c0_50], %98 {strides = array<i32>} : memref<12x128xf32, #tpu.memory_space<vmem>>, vector<10x128xf32>,
    %c0_51 = arith.constant 0 : index
    %c0_52 = arith.constant 0 : index
    %101 = vector.load %arg6[%c0_51, %c0_52] : memref<12x128xf32, #tpu.memory_space<vmem>>, vector<8x128xf32>
    %c1_53 = arith.constant 1 : index
    %c0_54 = arith.constant 0 : index
    %102 = vector.load %arg6[%c1_53, %c0_54] : memref<12x128xf32, #tpu.memory_space<vmem>>, vector<8x128xf32>
    %103 = arith.maximumf %101, %102 : vector<8x128xf32>
    %c2_55 = arith.constant 2 : index
    %c0_56 = arith.constant 0 : index
    %104 = vector.load %arg6[%c2_55, %c0_56] : memref<12x128xf32, #tpu.memory_space<vmem>>, vector<8x128xf32>
    %105 = arith.maximumf %103, %104 : vector<8x128xf32>
    %c1_57 = arith.constant 1 : index
    %c0_58 = arith.constant 0 : index
    %106 = vector.load %arg7[%c1_57, %c0_58] : memref<12x128xf32, #tpu.memory_space<vmem>>, vector<8x128xf32>
    %c0_59 = arith.constant 0 : index
    %c0_60 = arith.constant 0 : index
    %c0_61 = arith.constant 0 : index
    %107 = vector.load %arg3[%c0_59, %c0_60, %c0_61] : memref<1x8x128xf32, #tpu.memory_space<vmem>>, vector<1x8x128xf32>
    %108 = vector.shape_cast %107 : vector<1x8x128xf32> to vector<8x128xf32>
    %109 = vector.shape_cast %106 : vector<8x128xf32> to vector<1x8x128xf32>
    tpu.vector_store %arg3[%c0_59, %c0_60, %c0_61], %109 {strides = array<i32>} : memref<1x8x128xf32, #tpu.memory_space<vmem>>, vector<1x8x128xf32>,
    %110 = arith.cmpf oge, %106, %105 : vector<8x128xf32>
    %cst_62 = arith.constant 0.000000e+00 : f32
    %111 = vector.broadcast %cst_62 : f32 to vector<8x128xf32>
    %112 = arith.cmpf ogt, %106, %111 : vector<8x128xf32>
    %113 = arith.andi %110, %112 : vector<8x128xi1>
    %114 = arith.extui %113 : vector<8x128xi1> to vector<8x128xi32>
    %115 = arith.sitofp %114 : vector<8x128xi32> to vector<8x128xf32>
    %c0_63 = arith.constant 0 : index
    %c0_64 = arith.constant 0 : index
    %c0_65 = arith.constant 0 : index
    %116 = vector.load %arg4[%c0_63, %c0_64, %c0_65] : memref<1x8x128xf32, #tpu.memory_space<vmem>>, vector<1x8x128xf32>
    %117 = vector.shape_cast %116 : vector<1x8x128xf32> to vector<8x128xf32>
    %118 = vector.shape_cast %115 : vector<8x128xf32> to vector<1x8x128xf32>
    tpu.vector_store %arg4[%c0_63, %c0_64, %c0_65], %118 {strides = array<i32>} : memref<1x8x128xf32, #tpu.memory_space<vmem>>, vector<1x8x128xf32>,
    return
  }
  func.func @transform_1(%arg0: i32, %arg1: i32) -> (i32, i32, i32) {
    %c0_i32 = arith.constant 0 : i32
    %c0_i32_0 = arith.constant 0 : i32
    return %arg0, %arg1, %c0_i32 : i32, i32, i32
  }
  func.func @transform_2(%arg0: i32, %arg1: i32) -> (i32, i32, i32) {
    %c0_i32 = arith.constant 0 : i32
    %c0_i32_0 = arith.constant 0 : i32
    return %arg0, %arg1, %c0_i32 : i32, i32, i32
  }
}

</mosaic_0001>

<llo_original>
// kernel: tpu_custom_call.1
$region0: #{tpu_custom_call.1}
  #allocation0 [shape = 'u32[]', space=smem, size = 0x4, offset = 0x4, fixed_abs, tag = 'smem constant byte address 0x4 - core index']
  #allocation1 [shape = 'u32[144,128]{1,0:T(1,128)}', space=vmem, size = 0x12000, scoped, tag = 'internal scratch']
  #allocation2 [shape = 'f32[14,128]{1,0:T(8,128)}', space=vmem, size = 0x2000, scoped, tag = 'scratch operand']
  #allocation3 [shape = 'f32[12,128]{1,0:T(8,128)}', space=vmem, size = 0x2000, scoped, tag = 'scratch operand']
  #allocation4 [shape = 'f32[12,128]{1,0:T(8,128)}', space=vmem, size = 0x2000, scoped, tag = 'scratch operand']
  #allocation5 [shape = 's32[1]{0}', space=sflag, size = 0x4, scoped, tag = 'scratch operand']
  #allocation10 [shape = 's32[]', space=sflag, size = 0x4, offset = 0, fixed_abs, tag = 'sflag constant byte address 0x0 - dummy sync flag']
  %s0 = inlined_call_operand.vmem [shape: f32[2,22,128], index: 0, kind: input, shape index: {}]
  %s1 = inlined_call_operand.hbm [shape: f32[2,16,128], index: 1, kind: output, shape index: {0}]
  %s2 = inlined_call_operand.hbm [shape: f32[2,16,128], index: 2, kind: output, shape index: {1}]
  %3 = xla_tuple %s1, %s2
  %s4 = sld [smem:[#allocation0]]
  $region70: #{tpu_custom_call.1} parent=0
    _
  %s6 = ssub.s32 1, %s4
  %s7 = scalar_select 0, %s6, %s4
  $region1: #{tpu_custom_call.1} parent=0
    #allocation6 [shape = 'u8[8192]{0}', space=vmem, size = 0x2000, scoped, tag = 'output window, operand 0']
    #allocation7 [shape = 's32[2]{0}', space=sflag, size = 0x8, scoped, tag = 'scoped memory for tpu_custom_call.1']
    #allocation8 [shape = 'u8[8192]{0}', space=vmem, size = 0x2000, scoped, tag = 'output window, operand 1']
    #allocation9 [shape = 's32[2]{0}', space=sflag, size = 0x8, scoped, tag = 'scoped memory for tpu_custom_call.1']
    %8 = vsyncpa [#allocation7], 0
    %s9 = scalar_lea.sflag [#allocation7], 1
    %10 = vsyncpa %s9, 0
    %11 = vsyncpa [#allocation9], 0
    %s12 = scalar_lea.sflag [#allocation9], 1
    %13 = vsyncpa %s12, 0
    loop: start=0, step=1, limit=5
    $region2: #{tpu_custom_call.1} parent=1 // loop_pre_header
      _
    $region3: #{tpu_custom_call.1} parent=1 // loop_header
      %s15 = sphi 0, %s19
      %p16 = scmp.ge.s32.totalorder %s15, 5
      %s21 = sphi 0, %s31
      %s22 = sphi 0, %s27
      %s23 = sphi 0, %s21
      %s24 = sphi 0, %s22
      %s36 = sphi 0, %s38
      %s39 = sphi 0, %s36
      %s49 = sphi 0, %s39
      %s57 = sphi 0, %s59
      %s60 = sphi 0, %s57
      %s70 = sphi 0, %s60
    $region4: #{tpu_custom_call.1} parent=1 // loop_header_branch
      %18 = sbr.rel (%p16) target = $region8
    $region5: #{tpu_custom_call.1} parent=1 // loop_body
      %s20 = ssub.s32 %s15, 1
      %s25 = sadd.s32 1, %s22
      %p26 = scmp.ge.s32.totalorder %s25, 2
      %s27 = scalar_select %p26, 0, %s25
      %s28 = sadd.s32 1, %s21
      %s29 = scalar_select %p26, %s28, %s21
      %p30 = scmp.ge.s32.totalorder %s29, 2
      %s31 = scalar_select %p30, 0, %s29
      %s32 = ssub.s32 %s21, %s31
      %s33 = ssub.s32 %s22, %s27
      %s34 = sor.u32 %s32, %s33
      %p35 = scmp.eq.s32.totalorder %s34, 0
      %s37 = sadd.s32 %s36, 1
      %s38 = scalar_select %p35, %s36, %s37
      %p40 = pneg %p35
      %p41 = scmp.eq.s32.totalorder %s15, 3
      %p42 = por %p40, %p41
      %p43 = scmp.ne.s32.totalorder %s36, %s39
      %p44 = scmp.eq.s32.totalorder %s15, 0
      %p45 = por %p43, %p44
      %p46 = scmp.ne.s32.totalorder %s36, %s39
      %p47 = scmp.eq.s32.totalorder %s20, 3
      %p48 = por %p46, %p47
      %p50 = scmp.ne.s32.totalorder %s39, %s49
      %p51 = scmp.eq.s32.totalorder %s20, 0
      %p52 = por %p50, %p51
      %s53 = ssub.s32 %s21, %s31
      %s54 = ssub.s32 %s22, %s27
      %s55 = sor.u32 %s53, %s54
      %p56 = scmp.eq.s32.totalorder %s55, 0
      %s58 = sadd.s32 %s57, 1
      %s59 = scalar_select %p56, %s57, %s58
      %p61 = pneg %p56
      %p62 = scmp.eq.s32.totalorder %s15, 3
      %p63 = por %p61, %p62
      %p64 = scmp.ne.s32.totalorder %s57, %s60
      %p65 = scmp.eq.s32.totalorder %s15, 0
      %p66 = por %p64, %p65
      %p67 = scmp.ne.s32.totalorder %s57, %s60
      %p68 = scmp.eq.s32.totalorder %s20, 3
      %p69 = por %p67, %p68
      %p71 = scmp.ne.s32.totalorder %s60, %s70
      %p72 = scmp.eq.s32.totalorder %s20, 0
      %p73 = por %p71, %p72
      %p74 = scmp.lt.s32.totalorder %s15, 4
      // Predicated region
      $region9: #{tpu_custom_call.1} parent=5 // pred_check
        %p75 = pneg %p74
      $region10: #{tpu_custom_call.1} parent=5 // pred_check_branch
        %77 = sbr.rel (%p75) target = $region12
      $region11: #{tpu_custom_call.1} parent=5 // pred_region
        %p78 = pneg %p45
        %p79 = pneg %p42
        %s80 = sand.u32 %s36, 1
        %s81 = scalar_lea.sflag [#allocation7], %s80
        %s82 = sand.u32 %s36, 1
        %s83 = smul.addr %s82, 8
        %s84 = scalar_lea.vmem [#allocation6], %s83
        %p85 = pneg %p66
        %p86 = pneg %p63
        %s87 = sand.u32 %s57, 1
        %s88 = scalar_lea.sflag [#allocation9], %s87
        %s89 = sand.u32 %s57, 1
        %s90 = smul.addr %s89, 8
        %s91 = scalar_lea.vmem [#allocation8], %s90
        %s92 = smul.u32 %s22, 8
        %s93 = smul.u32 %s21, 24
        %s94 = sadd.s32 %s92, %s93
        %s95 = scalar_lea.vmem %s0, %s94
        %p97 = scmp.lt.u32.totalorder 14, 8
        %p98 = pneg %p97
        // Predicated region
        $region13: #{tpu_custom_call.1} parent=11 // pred_check
          _
        $region14: #{tpu_custom_call.1} parent=11 // pred_check_branch
          %100 = sbr.rel (%p97) target = $region16
        $region15: #{tpu_custom_call.1} parent=11 // pred_region
          %s116 = sand.u32 14, 7
          %p117 = scmp.eq.s32.totalorder %s116, 0
          %p118 = pneg %p117
          // Predicated region
          $region28: #{tpu_custom_call.1} parent=15 // pred_check
            _
          $region29: #{tpu_custom_call.1} parent=15 // pred_check_branch
            %120 = sbr.rel (%p117) target = $region31
          $region30: #{tpu_custom_call.1} parent=15 // pred_region
            %s121 = sand.u32 14, 7
            %s122 = ssub.s32 14, %s121
            %s123 = scalar_lea.vmem %s95, %s122
            %s124 = ssub.s32 14, %s121
            %s125 = scalar_lea.vmem [#allocation2], %s124
            loop: start=0, step=1, limit=1
            $region32: #{tpu_custom_call.1} parent=30 // loop_pre_header
              _
            $region33: #{tpu_custom_call.1} parent=30 // loop_header
              %s127 = sphi 0, %s131
              %p128 = scmp.ge.s32.totalorder %s127, 1
              %s132 = sphi %s95, %s95
              %s133 = sphi [#allocation2], [#allocation2]
            $region34: #{tpu_custom_call.1} parent=30 // loop_header_branch
              %130 = sbr.rel (%p128) target = $region38
            $region35: #{tpu_custom_call.1} parent=30 // loop_body
              %v134 = vld [vmem:[%s132] sm:$0xff]
              %135 = vst [vmem:[%s133] sm:$0xff] %v134
            $region36: #{tpu_custom_call.1} parent=30 // loop_footer
              %s131 = sadd.s32 1, %s127
            $region37: #{tpu_custom_call.1} parent=30 // loop_footer_branch
              %126 = sbr.rel target = $region33
            $region38: #{tpu_custom_call.1} parent=30 // loop_exit
              _
            %s136 = sshll.u32 1, %s121
            %s137 = ssub.s32 %s136, 1
            loop: start=0, step=1, limit=1
            $region39: #{tpu_custom_call.1} parent=30 // loop_pre_header
              _
            $region40: #{tpu_custom_call.1} parent=30 // loop_header
              %s139 = sphi 0, %s143
              %p140 = scmp.ge.s32.totalorder %s139, 1
              %s144 = sphi %s123, %s123
              %s145 = sphi %s125, %s125
            $region41: #{tpu_custom_call.1} parent=30 // loop_header_branch
              %142 = sbr.rel (%p140) target = $region45
            $region42: #{tpu_custom_call.1} parent=30 // loop_body
              %v146 = vld [vmem:[%s144] sm:%s137]
              %147 = vst [vmem:[%s145] sm:%s137] %v146
            $region43: #{tpu_custom_call.1} parent=30 // loop_footer
              %s143 = sadd.s32 1, %s139
            $region44: #{tpu_custom_call.1} parent=30 // loop_footer_branch
              %138 = sbr.rel target = $region40
            $region45: #{tpu_custom_call.1} parent=30 // loop_exit
              _
          $region31: #{tpu_custom_call.1} parent=15 // pred_fallthru
            _
        $region16: #{tpu_custom_call.1} parent=11 // pred_fallthru
          _
        // Predicated region
        $region17: #{tpu_custom_call.1} parent=11 // pred_check
          %p101 = pneg %p97
        $region18: #{tpu_custom_call.1} parent=11 // pred_check_branch
          %103 = sbr.rel (%p101) target = $region20
        $region19: #{tpu_custom_call.1} parent=11 // pred_region
          %s104 = sshll.u32 1, 14
          %s105 = ssub.s32 %s104, 1
          loop: start=0, step=1, limit=1
          $region21: #{tpu_custom_call.1} parent=19 // loop_pre_header
            _
          $region22: #{tpu_custom_call.1} parent=19 // loop_header
            %s107 = sphi 0, %s111
            %p108 = scmp.ge.s32.totalorder %s107, 1
            %s112 = sphi %s95, %s95
            %s113 = sphi [#allocation2], [#allocation2]
          $region23: #{tpu_custom_call.1} parent=19 // loop_header_branch
            %110 = sbr.rel (%p108) target = $region27
          $region24: #{tpu_custom_call.1} parent=19 // loop_body
            %v114 = vld [vmem:[%s112] sm:%s105]
            %115 = vst [vmem:[%s113] sm:%s105] %v114
          $region25: #{tpu_custom_call.1} parent=19 // loop_footer
            %s111 = sadd.s32 1, %s107
          $region26: #{tpu_custom_call.1} parent=19 // loop_footer_branch
            %106 = sbr.rel target = $region22
          $region27: #{tpu_custom_call.1} parent=19 // loop_exit
            _
        $region20: #{tpu_custom_call.1} parent=11 // pred_fallthru
          _
        // Predicated region
        $region46: #{tpu_custom_call.1} parent=11 // pred_check
          _
        $region47: #{tpu_custom_call.1} parent=11 // pred_check_branch
          %150 = sbr.rel (0) target = $region49
        $region48: #{tpu_custom_call.1} parent=11 // pred_region
          %151 = vsyncadd [#allocation5], 224
        $region49: #{tpu_custom_call.1} parent=11 // pred_fallthru
          _
        %s152 = smul.u32 14, 1
        %s153 = sshll.u32 %s152, 4
        %154 = dma.done [#allocation5], %s153
        %v155 = vld [vmem:[#allocation2] sm:$0xff]
        %v156 = vld [vmem:[#allocation2 + $0x8] sm:$0xf]
        %v157 = vld [vmem:[#allocation2 + $0x1] sm:$0xff]
        %v158 = vld [vmem:[#allocation2 + $0x9] sm:$0xf]
        %v159 = vld [vmem:[#allocation2 + $0x2] sm:$0xff]
        %v160 = vld [vmem:[#allocation2 + $0xa] sm:$0xf]
        %v161 = vmul.f32 %v157, 2.0
        %v162 = vmul.f32 %v158, 2.0
        %v163 = vadd.f32 %v155, %v161
        %v164 = vadd.f32 %v156, %v162
        %v165 = vadd.f32 %v163, %v159
        %v166 = vadd.f32 %v164, %v160
        %v167 = vsub.f32 %v159, %v155
        %v168 = vsub.f32 %v160, %v156
        %169 = vrot.lane.b32.xlu0 %v165, 127
        %v170 = vpop.permute.xlu0 %169
        %171 = vrot.lane.b32.xlu0 %v166, 127
        %v172 = vpop.permute.xlu0 %171
        %173 = vrot.lane.b32.xlu0 %v165, 1
        %v174 = vpop.permute.xlu0 %173
        %175 = vrot.lane.b32.xlu0 %v166, 1
        %v176 = vpop.permute.xlu0 %175
        %v177 = vsub.f32 %v170, %v174
        %v178 = vsub.f32 %v172, %v176
        %179 = vrot.lane.b32.xlu0 %v167, 127
        %v180 = vpop.permute.xlu0 %179
        %181 = vrot.lane.b32.xlu0 %v168, 127
        %v182 = vpop.permute.xlu0 %181
        %v183 = vmul.f32 %v167, 2.0
        %v184 = vmul.f32 %v168, 2.0
        %v185 = vadd.f32 %v180, %v183
        %v186 = vadd.f32 %v182, %v184
        %187 = vrot.lane.b32.xlu0 %v167, 1
        %v188 = vpop.permute.xlu0 %187
        %189 = vrot.lane.b32.xlu0 %v168, 1
        %v190 = vpop.permute.xlu0 %189
        %v191 = vadd.f32 %v185, %v188
        %v192 = vadd.f32 %v186, %v190
        %v193 = vmul.f32 %v177, %v177
        %v194 = vmul.f32 %v178, %v178
        %195 = vrot.lane.b32.xlu0 %v193, 1
        %v196 = vpop.permute.xlu0 %195
        %197 = vrot.lane.b32.xlu0 %v194, 1
        %v198 = vpop.permute.xlu0 %197
        %v199 = vadd.f32 %v196, %v193
        %v200 = vadd.f32 %v198, %v194
        %201 = vrot.lane.b32.xlu0 %v193, 127
        %v202 = vpop.permute.xlu0 %201
        %203 = vrot.lane.b32.xlu0 %v194, 127
        %v204 = vpop.permute.xlu0 %203
        %v205 = vadd.f32 %v199, %v202
        %v206 = vadd.f32 %v200, %v204
        %207 = vst [vmem:[#allocation3] sm:$0xff] %v205
        %208 = vst [vmem:[#allocation3 + $0x8] sm:$0xf] %v206
        %v209 = vld [vmem:[#allocation3] sm:$0xff]
        %v210 = vld [vmem:[#allocation3 + $0x8] sm:$0x3]
        %v211 = vld [vmem:[#allocation3 + $0x1] sm:$0xff]
        %v212 = vld [vmem:[#allocation3 + $0x9] sm:$0x3]
        %v213 = vadd.f32 %v209, %v211
        %v214 = vadd.f32 %v210, %v212
        %v215 = vld [vmem:[#allocation3 + $0x2] sm:$0xff]
        %v216 = vld [vmem:[#allocation3 + $0xa] sm:$0x3]
        %v217 = vadd.f32 %v213, %v215
        %v218 = vadd.f32 %v214, %v216
        %v219 = vmul.f32 %v191, %v191
        %v220 = vmul.f32 %v192, %v192
        %221 = vrot.lane.b32.xlu0 %v219, 1
        %v222 = vpop.permute.xlu0 %221
        %223 = vrot.lane.b32.xlu0 %v220, 1
        %v224 = vpop.permute.xlu0 %223
        %v225 = vadd.f32 %v222, %v219
        %v226 = vadd.f32 %v224, %v220
        %227 = vrot.lane.b32.xlu0 %v219, 127
        %v228 = vpop.permute.xlu0 %227
        %229 = vrot.lane.b32.xlu0 %v220, 127
        %v230 = vpop.permute.xlu0 %229
        %v231 = vadd.f32 %v225, %v228
        %v232 = vadd.f32 %v226, %v230
        %233 = vst [vmem:[#allocation4] sm:$0xff] %v231
        %234 = vst [vmem:[#allocation4 + $0x8] sm:$0xf] %v232
        %v235 = vld [vmem:[#allocation4] sm:$0xff]
        %v236 = vld [vmem:[#allocation4 + $0x8] sm:$0x3]
        %v237 = vld [vmem:[#allocation4 + $0x1] sm:$0xff]
        %v238 = vld [vmem:[#allocation4 + $0x9] sm:$0x3]
        %v239 = vadd.f32 %v235, %v237
        %v240 = vadd.f32 %v236, %v238
        %v241 = vld [vmem:[#allocation4 + $0x2] sm:$0xff]
        %v242 = vld [vmem:[#allocation4 + $0xa] sm:$0x3]
        %v243 = vadd.f32 %v239, %v241
        %v244 = vadd.f32 %v240, %v242
        %v245 = vmul.f32 %v177, %v191
        %v246 = vmul.f32 %v178, %v192
        %247 = vrot.lane.b32.xlu0 %v245, 1
        %v248 = vpop.permute.xlu0 %247
        %249 = vrot.lane.b32.xlu0 %v246, 1
        %v250 = vpop.permute.xlu0 %249
        %v251 = vadd.f32 %v248, %v245
        %v252 = vadd.f32 %v250, %v246
        %253 = vrot.lane.b32.xlu0 %v245, 127
        %v254 = vpop.permute.xlu0 %253
        %255 = vrot.lane.b32.xlu0 %v246, 127
        %v256 = vpop.permute.xlu0 %255
        %v257 = vadd.f32 %v251, %v254
        %v258 = vadd.f32 %v252, %v256
        %259 = vst [vmem:[#allocation3] sm:$0xff] %v257
        %260 = vst [vmem:[#allocation3 + $0x8] sm:$0xf] %v258
        %v261 = vld [vmem:[#allocation3] sm:$0xff]
        %v262 = vld [vmem:[#allocation3 + $0x8] sm:$0x3]
        %v263 = vld [vmem:[#allocation3 + $0x1] sm:$0xff]
        %v264 = vld [vmem:[#allocation3 + $0x9] sm:$0x3]
        %v265 = vadd.f32 %v261, %v263
        %v266 = vadd.f32 %v262, %v264
        %v267 = vld [vmem:[#allocation3 + $0x2] sm:$0xff]
        %v268 = vld [vmem:[#allocation3 + $0xa] sm:$0x3]
        %v269 = vadd.f32 %v265, %v267
        %v270 = vadd.f32 %v266, %v268
        %v271 = vadd.f32 %v217, %v243
        %v272 = vadd.f32 %v218, %v244
        %v273 = vmul.f32 %v271, 0.5
        %v274 = vmul.f32 %v272, 0.5
        %v275 = vsub.f32 %v217, %v243
        %v276 = vsub.f32 %v218, %v244
        %v277 = vmul.f32 %v275, 0.5
        %v278 = vmul.f32 %v276, 0.5
        %v279 = vmul.f32 %v277, %v277
        %v280 = vmul.f32 %v278, %v278
        %v281 = vmul.f32 %v269, %v269
        %v282 = vmul.f32 %v270, %v270
        %v283 = vadd.f32 %v279, %v281
        %v284 = vadd.f32 %v280, %v282
        %v285 = vrsqrt.pop %v283
        %v286 = vmul.f32 %v283, %v285
        %vm287 = vcmp.eq.f32.partialorder %v283, inf
        %v288 = vsel %vm287, %v283, %v286
        %vm289 = vcmp.eq.f32.partialorder %v283, 0.0
        %v290 = vand.u32 %v283, 2147483648
        %v291 = vsel %vm289, %v290, %v288
        %v292 = vrsqrt.pop %v284
        %v293 = vmul.f32 %v284, %v292
        %vm294 = vcmp.eq.f32.partialorder %v284, inf
        %v295 = vsel %vm294, %v284, %v293
        %vm296 = vcmp.eq.f32.partialorder %v284, 0.0
        %v297 = vand.u32 %v284, 2147483648
        %v298 = vsel %vm296, %v297, %v295
        %v299 = vsub.f32 %v273, %v291
        %v300 = vsub.f32 %v274, %v298
        %v301 = vlaneseq
        %v302 = vand.u32 %v301, 127
        %vm303 = vcmp.ge.s32.totalorder %v302, 2
        %vm304 = vcmp.lt.s32.totalorder %v302, 14
        %vm305 = vmand %vm303, %vm304
        %v306 = vsel %vm305, 1, 0
        %v307 = vcvt.s32.f32 %v306
        %v308 = vlaneseq
        %v309 = vshrl.u32 %v308, 7
        %v310 = vadd.s32 %v309, 8
        %s311 = ssub.s32 %s92, 1
        %v312 = vstv %s311
        %v313 = vadd.s32 %v309, %v312
        %v314 = vadd.s32 %v310, %v312
        %vm315 = vcmp.ge.s32.totalorder %v313, 2
        %vm316 = vcmp.ge.s32.totalorder %v314, 2
        %vm317 = vcmp.lt.s32.totalorder %v313, 14
        %vm318 = vcmp.lt.s32.totalorder %v314, 14
        %vm319 = vmand %vm315, %vm317
        %vm320 = vmand %vm316, %vm318
        %v321 = vsel %vm319, 1, 0
        %v322 = vsel %vm320, 1, 0
        %v323 = vcvt.s32.f32 %v321
        %v324 = vcvt.s32.f32 %v322
        %v325 = vmul.f32 %v299, %v323
        %v326 = vmul.f32 %v300, %v324
        %v327 = vmul.f32 %v325, %v307
        %v328 = vmul.f32 %v326, %v307
        %329 = vrot.lane.b32.xlu0 %v327, 1
        %v330 = vpop.permute.xlu0 %329
        %331 = vrot.lane.b32.xlu0 %v328, 1
        %v332 = vpop.permute.xlu0 %331
        %v333 = vmax.f32 %v330, %v327
        %v334 = vmax.f32 %v332, %v328
        %335 = vrot.lane.b32.xlu0 %v327, 127
        %v336 = vpop.permute.xlu0 %335
        %337 = vrot.lane.b32.xlu0 %v328, 127
        %v338 = vpop.permute.xlu0 %337
        %v339 = vmax.f32 %v333, %v336
        %v340 = vmax.f32 %v334, %v338
        %341 = vst [vmem:[#allocation4] sm:$0xff] %v327
        %342 = vst [vmem:[#allocation4 + $0x8] sm:$0x3] %v328
        %343 = vst [vmem:[#allocation3] sm:$0xff] %v339
        %344 = vst [vmem:[#allocation3 + $0x8] sm:$0x3] %v340
        %v345 = vld [vmem:[#allocation3] sm:$0xff]
        %v346 = vld [vmem:[#allocation3 + $0x1] sm:$0xff]
        %v347 = vmax.f32 %v345, %v346
        %v348 = vld [vmem:[#allocation3 + $0x2] sm:$0xff]
        %v349 = vmax.f32 %v347, %v348
        %v350 = vld [vmem:[#allocation4 + $0x1] sm:$0xff]
        %351 = vst [vmem:[%s84] sm:$0xff] %v350
        %vm352 = vcmp.ge.f32.partialorder %v350, %v349
        %vm353 = vcmp.gt.f32.partialorder %v350, 0.0
        %vm354 = vmand %vm352, %vm353
        %v355 = vsel %vm354, 1, 0
        %v356 = vcvt.s32.f32 %v355
        %357 = vst [vmem:[%s91] sm:$0xff] %v356
        %s358 = sand.u32 %s36, 1
        %s359 = scalar_lea.sflag [#allocation7], %s358
        %s360 = sand.u32 %s36, 1
        %s361 = smul.addr %s360, 8
        %s362 = scalar_lea.vmem [#allocation6], %s361
        %s363 = sand.u32 %s57, 1
        %s364 = scalar_lea.sflag [#allocation9], %s363
        %s365 = sand.u32 %s57, 1
        %s366 = smul.addr %s365, 8
        %s367 = scalar_lea.vmem [#allocation8], %s366
        // Predicated region
        $region50: #{tpu_custom_call.1} parent=11 // pred_check
          %p368 = pneg %p42
        $region51: #{tpu_custom_call.1} parent=11 // pred_check_branch
          %370 = sbr.rel (%p368) target = $region53
        $region52: #{tpu_custom_call.1} parent=11 // pred_region
          %s372 = ssub.s32 128, 128
          %373 = vsyncadd %s359, %s372
          %s374 = smul.addr %s21, 2
          %s375 = sadd.s32 %s22, %s374
          %s376 = smul.addr %s375, 128
          %s377 = scalar_lea.hbm %s1, %s376
          %s379 = sshll.u32 %s362, 4
          %s380 = int_to_ptr.vmem [resolvable:$true] %s379
          %382 = dma.vmem_to_hbm [thread:$0]  %s380, 128, %s377, %s359
        $region53: #{tpu_custom_call.1} parent=11 // pred_fallthru
          _
        // Predicated region
        $region54: #{tpu_custom_call.1} parent=11 // pred_check
          %p383 = pneg %p63
        $region55: #{tpu_custom_call.1} parent=11 // pred_check_branch
          %385 = sbr.rel (%p383) target = $region57
        $region56: #{tpu_custom_call.1} parent=11 // pred_region
          %s387 = ssub.s32 128, 128
          %388 = vsyncadd %s364, %s387
          %s389 = smul.addr %s21, 2
          %s390 = sadd.s32 %s22, %s389
          %s391 = smul.addr %s390, 128
          %s392 = scalar_lea.hbm %s2, %s391
          %s394 = sshll.u32 %s367, 4
          %s395 = int_to_ptr.vmem [resolvable:$true] %s394
          %397 = dma.vmem_to_hbm [thread:$0]  %s395, 128, %s392, %s364
        $region57: #{tpu_custom_call.1} parent=11 // pred_fallthru
          _
      $region12: #{tpu_custom_call.1} parent=5 // pred_fallthru
        _
      %p398 = scmp.le.s32.totalorder 1, %s15
      // Predicated region
      $region58: #{tpu_custom_call.1} parent=5 // pred_check
        %p399 = pneg %p398
      $region59: #{tpu_custom_call.1} parent=5 // pred_check_branch
        %401 = sbr.rel (%p399) target = $region61
      $region60: #{tpu_custom_call.1} parent=5 // pred_region
        %s402 = ssub.s32 %s15, 1
        // Predicated region
        $region62: #{tpu_custom_call.1} parent=60 // pred_check
          %p403 = pneg %p48
        $region63: #{tpu_custom_call.1} parent=60 // pred_check_branch
          %405 = sbr.rel (%p403) target = $region65
        $region64: #{tpu_custom_call.1} parent=60 // pred_region
          %s406 = sand.u32 %s39, 1
          %s407 = scalar_lea.sflag [#allocation7], %s406
          %s408 = sand.u32 %s39, 1
          %s409 = smul.addr %s408, 8
          %s410 = scalar_lea.vmem [#allocation6], %s409
          %411 = dma.done %s407, 128
        $region65: #{tpu_custom_call.1} parent=60 // pred_fallthru
          _
        // Predicated region
        $region66: #{tpu_custom_call.1} parent=60 // pred_check
          %p412 = pneg %p69
        $region67: #{tpu_custom_call.1} parent=60 // pred_check_branch
          %414 = sbr.rel (%p412) target = $region69
        $region68: #{tpu_custom_call.1} parent=60 // pred_region
          %s415 = sand.u32 %s60, 1
          %s416 = scalar_lea.sflag [#allocation9], %s415
          %s417 = sand.u32 %s60, 1
          %s418 = smul.addr %s417, 8
          %s419 = scalar_lea.vmem [#allocation8], %s418
          %420 = dma.done %s416, 128
        $region69: #{tpu_custom_call.1} parent=60 // pred_fallthru
          _
      $region61: #{tpu_custom_call.1} parent=5 // pred_fallthru
        _
    $region6: #{tpu_custom_call.1} parent=1 // loop_footer
      %s19 = sadd.s32 1, %s15
    $region7: #{tpu_custom_call.1} parent=1 // loop_footer_branch
      %14 = sbr.rel target = $region3
    $region8: #{tpu_custom_call.1} parent=1 // loop_exit
      _
    %421 = vsyncpa [#allocation7], 1
    %s422 = scalar_lea.sflag [#allocation7], 1
    %423 = vsyncpa %s422, 1
    %424 = vsyncpa [#allocation9], 1
    %s425 = scalar_lea.sflag [#allocation9], 1
    %426 = vsyncpa %s425, 1
  %427 = vsyncmov [#allocation5]
  %s428 = vpop.sfrf %427
  %p429 = scmp.eq.s32.totalorder %s428, 0
  %p430 = pneg %p429
  %432 = shalt.err (%p430)

</llo_original>
